<compile_context>
chip_gen: v5e
topology: v5e:2x2
jax: 0.10.0
libtpu: 0.0.40
codegen_flags: <defaults>
</compile_context>

<pallas_src>
import functools

import jax
import jax.numpy as jnp
from jax.experimental import pallas as pl
from jax.experimental.pallas import tpu as pltpu


# ---- "config" values the PyTorch module reads from a global config ----------
NUM_OUTPUTS = 1
BALANCE_WEIGHTS = (1.0,)
IGNORE_LABEL = -1
# TODO(synk): PyTorch F.interpolate(align_corners=True) has no exact
# jax.image.resize equivalent; align_corners=False semantics are used here.


def _round_up(x, m):
    return ((x + m - 1) // m) * m


def _cdiv(a, b):
    return -(-a // b)


def _vmem_budget_and_limit():
    """Generation-aware VMEM budget for block sizing + compiler vmem limit."""
    try:
        vmem = int(pltpu.get_tpu_info().vmem_capacity_bytes)
    except Exception:
        vmem = 64 * 1024 * 1024  # conservative: assume v7x-sized VMEM
    if vmem >= 96 * 1024 * 1024:            # v5e / v6e (128 MiB physical)
        return 48 * 1024 * 1024, 64 * 1024 * 1024
    return 24 * 1024 * 1024, 48 * 1024 * 1024   # v7x (64 MiB physical)


def _pick_rows(num_classes, p_rows, itemsize, desired_pixels, budget_bytes):
    """Pick S = number of 128-pixel rows per tile (multiple of 8, or the full
    row count) whose double-buffered logits+target blocks plus resident
    accumulators fit the VMEM budget."""
    per_row = 2 * 128 * (num_classes * itemsize + 4 + 8)
    s = max(8, (desired_pixels // 128 // 8) * 8)
    while s > 8 and s * per_row > budget_bytes:
        s = max(8, ((s // 2) // 8) * 8)
    if p_rows <= s:
        return p_rows          # single tile; block dim == full array dim is OK
    return s


def _ce_sum_kernel(logits_ref, target_ref, loss_ref, cnt_ref, *,
                   num_classes, ignore_label, tiles_per_chunk, s_rows, p_rows,
                   need_tail_mask):
    """Accumulate per-pixel CE losses and valid-pixel counts into dense
    (S, 128) per-(image, chunk) accumulators; final reduction in the wrapper."""
    # Fresh accumulators at the first tile of every (image, chunk).
    @pl.when(pl.program_id(2) == 0)
    def _():
        loss_ref[...] = jnp.zeros_like(loss_ref)
        cnt_ref[...] = jnp.zeros_like(cnt_ref)

    tgt = target_ref[0]                                   # (S, 128) int32

    # Running max over classes: pure VPU elementwise ops over dense (S, 128)
    # vreg slabs (class axis is non-minor -> no XLU sublane reductions).
    m = logits_ref[0, 0].astype(jnp.float32)
    for cc in range(1, num_classes):
        m = jnp.maximum(m, logits_ref[0, cc].astype(jnp.float32))

    # Fused second pass: exp-sum (EUP) + target-class logit gather (VPU),
    # reading each class slab straight from the input VMEM block.
    sum_e = jnp.zeros_like(m)
    tgt_logit = jnp.zeros_like(m)
    for cc in range(num_classes):
        x = logits_ref[0, cc].astype(jnp.float32)
        sum_e = sum_e + jnp.exp(x - m)
        tgt_logit = tgt_logit + jnp.where(tgt == cc, x, 0.0)

    lse = m + jnp.log(sum_e)                              # stable log-sum-exp
    valid = tgt != ignore_label                           # (S, 128) bool

    if need_tail_mask:
        # Mask rows past the true 128-pixel row count (partial last tile and
        # clamped overflow tiles from the megacore chunking).
        gt = pl.program_id(1) * tiles_per_chunk + pl.program_id(2)
        row = gt * s_rows + jax.lax.broadcasted_iota(jnp.int32, tgt.shape, 0)
        valid = jnp.logical_and(valid, row < p_rows)

    per_pix = jnp.where(valid, lse - tgt_logit, 0.0)

    loss_ref[0, 0] = loss_ref[0, 0] + per_pix
    cnt_ref[0, 0] = cnt_ref[0, 0] + valid.astype(jnp.float32)


def _cross_entropy_2d(logits_nchw, target_nhw, ignore_label=IGNORE_LABEL,
                      desired_pixels=32768):
    """Mean cross-entropy over non-ignored pixels (== nn.CrossEntropyLoss)."""
    n, c, h, w = logits_nchw.shape
    th, tw = target_nhw.shape[1], target_nhw.shape[2]
    if (h, w) != (th, tw):
        # Glue: bilinear resize of logits to target size (rare path).
        logits_nchw = jax.image.resize(
            logits_nchw, (n, c, th, tw), method="bilinear")
        h, w = th, tw

    hw = h * w
    hw128 = _round_up(hw, 128)
    logits = logits_nchw.reshape(n, c, hw)                 # free reshape
    target = target_nhw.reshape(n, hw).astype(jnp.int32)
    if hw128 != hw:
        # TODO(synk): rare path (H*W not a multiple of 128) pays one HBM copy
        # of the logits; all 128-divisible spatial sizes are copy-free.
        logits = jnp.pad(logits, ((0, 0), (0, 0), (0, hw128 - hw)))
        target = jnp.pad(target, ((0, 0), (0, hw128 - hw)),
                         constant_values=ignore_label)

    p_rows = hw128 // 128
    # Free reshapes: pixel axis split into rows of 128 lanes; no transpose.
    logits = logits.reshape(n, c, p_rows, 128)
    target = target.reshape(n, p_rows, 128)

    itemsize = jnp.dtype(logits.dtype).itemsize            # bf16 inputs welcome
    budget, vmem_limit = _vmem_budget_and_limit()
    s_rows = _pick_rows(c, p_rows, itemsize, desired_pixels, budget)

    total_tiles = _cdiv(p_rows, s_rows)
    n_chunks = 2 if total_tiles >= 2 else 1   # v7x megacore sharding of pixels
    tpc = _cdiv(total_tiles, n_chunks)
    need_tail_mask = (p_rows % s_rows != 0) or (n_chunks * tpc != total_tiles)

    def _tile_idx(ck, j):
        # Clamp so DMAs never start past the array; overflow tiles re-read the
        # last block and are fully masked out by the in-kernel row check.
        return jnp.minimum(ck * tpc + j, total_tiles - 1)

    kernel = functools.partial(
        _ce_sum_kernel, num_classes=c, ignore_label=ignore_label,
        tiles_per_chunk=tpc, s_rows=s_rows, p_rows=p_rows,
        need_tail_mask=need_tail_mask)

    loss_part, cnt_part = pl.pallas_call(
        kernel,
        out_shape=(
            jax.ShapeDtypeStruct((n, n_chunks, s_rows, 128), jnp.float32),
            jax.ShapeDtypeStruct((n, n_chunks, s_rows, 128), jnp.float32),
        ),
        grid_spec=pltpu.PrefetchScalarGridSpec(
            num_scalar_prefetch=0,
            grid=(n, n_chunks, tpc),
            in_specs=[
                pl.BlockSpec((1, c, s_rows, 128),
                             lambda i, ck, j: (i, 0, _tile_idx(ck, j), 0)),
                pl.BlockSpec((1, s_rows, 128),
                             lambda i, ck, j: (i, _tile_idx(ck, j), 0)),
            ],
            out_specs=[
                pl.BlockSpec((1, 1, s_rows, 128),
                             lambda i, ck, j: (i, ck, 0, 0)),
                pl.BlockSpec((1, 1, s_rows, 128),
                             lambda i, ck, j: (i, ck, 0, 0)),
            ],
        ),
        compiler_params=pltpu.CompilerParams(
            dimension_semantics=("parallel", "parallel", "arbitrary"),
            vmem_limit_bytes=vmem_limit,
        ),
    )(logits, target)

    # Single final cross-lane reduction + mean (outside the hot loop).
    loss_sum = jnp.sum(loss_part)
    cnt = jnp.sum(cnt_part)
    # TODO(synk): nn.CrossEntropyLoss returns NaN when every pixel is ignored;
    # we clamp the denominator and return 0 in that degenerate case.
    return loss_sum / jnp.maximum(cnt, 1.0)


def cross_entropy_forward(score, target):
    """Mirrors CrossEntropy.forward with NUM_OUTPUTS / BALANCE_WEIGHTS."""
    if NUM_OUTPUTS == 1:
        score = [score]
    weights = BALANCE_WEIGHTS
    assert len(weights) == len(score)
    return sum(w * _cross_entropy_2d(x, target) for w, x in zip(weights, score))


def _reference(score, target, ignore_label=IGNORE_LABEL):
    """Plain-JAX reference for validation."""
    n, c, h, w = score.shape
    logits = jnp.transpose(score, (0, 2, 3, 1)).reshape(-1, c).astype(jnp.float32)
    tgt = target.reshape(-1).astype(jnp.int32)
    valid = tgt != ignore_label
    safe_tgt = jnp.where(valid, tgt, 0)
    lse = jax.scipy.special.logsumexp(logits, axis=-1)
    tl = jnp.take_along_axis(logits, safe_tgt[:, None], axis=-1)[:, 0]
    per = jnp.where(valid, lse - tl, 0.0)
    return jnp.sum(per) / jnp.maximum(jnp.sum(valid.astype(jnp.float32)), 1.0)


if __name__ == "__main__":
    key = jax.random.PRNGKey(0)
    k1, k2, k3 = jax.random.split(key, 3)

    # Primary example: N=2, C=8, 16x16 spatial (single tile per image).
    N, C, H, W = 2, 8, 16, 16
    score = jax.random.normal(k1, (N, C, H, W), dtype=jnp.float32)
    target = jax.random.randint(k2, (N, H, W), 0, C, dtype=jnp.int32)
    ignore_mask = jax.random.uniform(k3, (N, H, W)) < 0.1
    target = jnp.where(ignore_mask, IGNORE_LABEL, target)

    loss = jax.block_until_ready(cross_entropy_forward(score, target))
    ref = _reference(score, target)
    assert jnp.allclose(loss, ref, atol=1e-4, rtol=1e-4), (loss, ref)

    # Stress the multi-tile / megacore-chunk / tail-mask path: 48x48 => 18 rows
    # of 128 pixels, forced 8-row tiles, 2 chunks, non-divisible tail.
    k4, k5, k6 = jax.random.split(jax.random.PRNGKey(1), 3)
    N2, C2, H2, W2 = 1, 5, 48, 48
    score2 = jax.random.normal(k4, (N2, C2, H2, W2), dtype=jnp.float32)
    target2 = jax.random.randint(k5, (N2, H2, W2), 0, C2, dtype=jnp.int32)
    target2 = jnp.where(jax.random.uniform(k6, (N2, H2, W2)) < 0.1,
                        IGNORE_LABEL, target2)
    loss2 = jax.block_until_ready(
        _cross_entropy_2d(score2, target2, desired_pixels=1024))
    ref2 = _reference(score2, target2)
    assert jnp.allclose(loss2, ref2, atol=1e-4, rtol=1e-4), (loss2, ref2)

    print("KERNEL_OK")
</pallas_src>

<mosaic_0001>
module attributes {stable_mosaic.version = 11 : i64} {
  func.func @_ce_sum_kernel(%arg0: i32, %arg1: i32, %arg2: i32, %arg3: memref<1x8x2x128xf32, #tpu.memory_space<vmem>>, %arg4: memref<1x2x128xi32, #tpu.memory_space<vmem>>, %arg5: memref<1x1x2x128xf32, #tpu.memory_space<vmem>>, %arg6: memref<1x1x2x128xf32, #tpu.memory_space<vmem>>) attributes {dimension_semantics = [#tpu.dimension_semantics<parallel>, #tpu.dimension_semantics<parallel>, #tpu.dimension_semantics<arbitrary>], iteration_bounds = array<i64: 2, 1, 1>, scalar_prefetch = 0 : i64, scratch_operands = 0 : i64, tpu.core_type = #tpu.core_type<tc>, window_params = [{transform_indices = @transform_0, window_bounds = array<i64: 1, 8, 2, 128>}, {transform_indices = @transform_1, window_bounds = array<i64: 1, 2, 128>}, {transform_indices = @transform_2, window_bounds = array<i64: 1, 1, 2, 128>}, {transform_indices = @transform_3, window_bounds = array<i64: 1, 1, 2, 128>}]} {
    %c0_i32 = arith.constant 0 : i32
    %0 = arith.cmpi eq, %arg2, %c0_i32 : i32
    %1 = arith.extui %0 : i1 to i32
    %c0_i32_0 = arith.constant 0 : i32
    %2 = arith.cmpi ne, %1, %c0_i32_0 : i32
    scf.if %2 {
      %cst_87 = arith.constant 0.000000e+00 : f32
      %131 = vector.broadcast %cst_87 : f32 to vector<1x1x2x128xf32>
      %c0_88 = arith.constant 0 : index
      %c0_89 = arith.constant 0 : index
      %c0_90 = arith.constant 0 : index
      %c0_91 = arith.constant 0 : index
      %132 = vector.load %arg5[%c0_88, %c0_89, %c0_90, %c0_91] : memref<1x1x2x128xf32, #tpu.memory_space<vmem>>, vector<1x1x2x128xf32>
      tpu.vector_store %arg5[%c0_88, %c0_89, %c0_90, %c0_91], %131 {strides = array<i32>} : memref<1x1x2x128xf32, #tpu.memory_space<vmem>>, vector<1x1x2x128xf32>,
      %cst_92 = arith.constant 0.000000e+00 : f32
      %133 = vector.broadcast %cst_92 : f32 to vector<1x1x2x128xf32>
      %c0_93 = arith.constant 0 : index
      %c0_94 = arith.constant 0 : index
      %c0_95 = arith.constant 0 : index
      %c0_96 = arith.constant 0 : index
      %134 = vector.load %arg6[%c0_93, %c0_94, %c0_95, %c0_96] : memref<1x1x2x128xf32, #tpu.memory_space<vmem>>, vector<1x1x2x128xf32>
      tpu.vector_store %arg6[%c0_93, %c0_94, %c0_95, %c0_96], %133 {strides = array<i32>} : memref<1x1x2x128xf32, #tpu.memory_space<vmem>>, vector<1x1x2x128xf32>,
    } else {
    }
    %c0 = arith.constant 0 : index
    %c0_1 = arith.constant 0 : index
    %c0_2 = arith.constant 0 : index
    %3 = vector.load %arg4[%c0, %c0_1, %c0_2] : memref<1x2x128xi32, #tpu.memory_space<vmem>>, vector<1x2x128xi32>
    %4 = vector.shape_cast %3 : vector<1x2x128xi32> to vector<2x128xi32>
    %c0_3 = arith.constant 0 : index
    %c0_4 = arith.constant 0 : index
    %c0_5 = arith.constant 0 : index
    %c0_6 = arith.constant 0 : index
    %5 = vector.load %arg3[%c0_3, %c0_4, %c0_5, %c0_6] : memref<1x8x2x128xf32, #tpu.memory_space<vmem>>, vector<1x1x2x128xf32>
    %6 = vector.shape_cast %5 : vector<1x1x2x128xf32> to vector<2x128xf32>
    %c0_7 = arith.constant 0 : index
    %c1 = arith.constant 1 : index
    %c0_8 = arith.constant 0 : index
    %c0_9 = arith.constant 0 : index
    %7 = vector.load %arg3[%c0_7, %c1, %c0_8, %c0_9] : memref<1x8x2x128xf32, #tpu.memory_space<vmem>>, vector<1x1x2x128xf32>
    %8 = vector.shape_cast %7 : vector<1x1x2x128xf32> to vector<2x128xf32>
    %9 = arith.maximumf %6, %8 : vector<2x128xf32>
    %c0_10 = arith.constant 0 : index
    %c2 = arith.constant 2 : index
    %c0_11 = arith.constant 0 : index
    %c0_12 = arith.constant 0 : index
    %10 = vector.load %arg3[%c0_10, %c2, %c0_11, %c0_12] : memref<1x8x2x128xf32, #tpu.memory_space<vmem>>, vector<1x1x2x128xf32>
    %11 = vector.shape_cast %10 : vector<1x1x2x128xf32> to vector<2x128xf32>
    %12 = arith.maximumf %9, %11 : vector<2x128xf32>
    %c0_13 = arith.constant 0 : index
    %c3 = arith.constant 3 : index
    %c0_14 = arith.constant 0 : index
    %c0_15 = arith.constant 0 : index
    %13 = vector.load %arg3[%c0_13, %c3, %c0_14, %c0_15] : memref<1x8x2x128xf32, #tpu.memory_space<vmem>>, vector<1x1x2x128xf32>
    %14 = vector.shape_cast %13 : vector<1x1x2x128xf32> to vector<2x128xf32>
    %15 = arith.maximumf %12, %14 : vector<2x128xf32>
    %c0_16 = arith.constant 0 : index
    %c4 = arith.constant 4 : index
    %c0_17 = arith.constant 0 : index
    %c0_18 = arith.constant 0 : index
    %16 = vector.load %arg3[%c0_16, %c4, %c0_17, %c0_18] : memref<1x8x2x128xf32, #tpu.memory_space<vmem>>, vector<1x1x2x128xf32>
    %17 = vector.shape_cast %16 : vector<1x1x2x128xf32> to vector<2x128xf32>
    %18 = arith.maximumf %15, %17 : vector<2x128xf32>
    %c0_19 = arith.constant 0 : index
    %c5 = arith.constant 5 : index
    %c0_20 = arith.constant 0 : index
    %c0_21 = arith.constant 0 : index
    %19 = vector.load %arg3[%c0_19, %c5, %c0_20, %c0_21] : memref<1x8x2x128xf32, #tpu.memory_space<vmem>>, vector<1x1x2x128xf32>
    %20 = vector.shape_cast %19 : vector<1x1x2x128xf32> to vector<2x128xf32>
    %21 = arith.maximumf %18, %20 : vector<2x128xf32>
    %c0_22 = arith.constant 0 : index
    %c6 = arith.constant 6 : index
    %c0_23 = arith.constant 0 : index
    %c0_24 = arith.constant 0 : index
    %22 = vector.load %arg3[%c0_22, %c6, %c0_23, %c0_24] : memref<1x8x2x128xf32, #tpu.memory_space<vmem>>, vector<1x1x2x128xf32>
    %23 = vector.shape_cast %22 : vector<1x1x2x128xf32> to vector<2x128xf32>
    %24 = arith.maximumf %21, %23 : vector<2x128xf32>
    %c0_25 = arith.constant 0 : index
    %c7 = arith.constant 7 : index
    %c0_26 = arith.constant 0 : index
    %c0_27 = arith.constant 0 : index
    %25 = vector.load %arg3[%c0_25, %c7, %c0_26, %c0_27] : memref<1x8x2x128xf32, #tpu.memory_space<vmem>>, vector<1x1x2x128xf32>
    %26 = vector.shape_cast %25 : vector<1x1x2x128xf32> to vector<2x128xf32>
    %27 = arith.maximumf %24, %26 : vector<2x128xf32>
    %cst = arith.constant 0.000000e+00 : f32
    %28 = vector.broadcast %cst : f32 to vector<2x128xf32>
    %cst_28 = arith.constant 0.000000e+00 : f32
    %29 = vector.broadcast %cst_28 : f32 to vector<2x128xf32>
    %c0_29 = arith.constant 0 : index
    %c0_30 = arith.constant 0 : index
    %c0_31 = arith.constant 0 : index
    %c0_32 = arith.constant 0 : index
    %30 = vector.load %arg3[%c0_29, %c0_30, %c0_31, %c0_32] : memref<1x8x2x128xf32, #tpu.memory_space<vmem>>, vector<1x1x2x128xf32>
    %31 = vector.shape_cast %30 : vector<1x1x2x128xf32> to vector<2x128xf32>
    %32 = arith.subf %31, %27 : vector<2x128xf32>
    %33 = math.exp %32 : vector<2x128xf32>
    %34 = arith.addf %28, %33 : vector<2x128xf32>
    %c0_i32_33 = arith.constant 0 : i32
    %35 = vector.broadcast %c0_i32_33 : i32 to vector<2x128xi32>
    %36 = arith.cmpi eq, %4, %35 : vector<2x128xi32>
    %cst_34 = arith.constant 0.000000e+00 : f32
    %37 = vector.broadcast %cst_34 : f32 to vector<2x128xf32>
    %38 = arith.select %36, %31, %37 : vector<2x128xi1>, vector<2x128xf32>
    %39 = arith.addf %29, %38 : vector<2x128xf32>
    %c0_35 = arith.constant 0 : index
    %c1_36 = arith.constant 1 : index
    %c0_37 = arith.constant 0 : index
    %c0_38 = arith.constant 0 : index
    %40 = vector.load %arg3[%c0_35, %c1_36, %c0_37, %c0_38] : memref<1x8x2x128xf32, #tpu.memory_space<vmem>>, vector<1x1x2x128xf32>
    %41 = vector.shape_cast %40 : vector<1x1x2x128xf32> to vector<2x128xf32>
    %42 = arith.subf %41, %27 : vector<2x128xf32>
    %43 = math.exp %42 : vector<2x128xf32>
    %44 = arith.addf %34, %43 : vector<2x128xf32>
    %c1_i32 = arith.constant 1 : i32
    %45 = vector.broadcast %c1_i32 : i32 to vector<2x128xi32>
    %46 = arith.cmpi eq, %4, %45 : vector<2x128xi32>
    %cst_39 = arith.constant 0.000000e+00 : f32
    %47 = vector.broadcast %cst_39 : f32 to vector<2x128xf32>
    %48 = arith.select %46, %41, %47 : vector<2x128xi1>, vector<2x128xf32>
    %49 = arith.addf %39, %48 : vector<2x128xf32>
    %c0_40 = arith.constant 0 : index
    %c2_41 = arith.constant 2 : index
    %c0_42 = arith.constant 0 : index
    %c0_43 = arith.constant 0 : index
    %50 = vector.load %arg3[%c0_40, %c2_41, %c0_42, %c0_43] : memref<1x8x2x128xf32, #tpu.memory_space<vmem>>, vector<1x1x2x128xf32>
    %51 = vector.shape_cast %50 : vector<1x1x2x128xf32> to vector<2x128xf32>
    %52 = arith.subf %51, %27 : vector<2x128xf32>
    %53 = math.exp %52 : vector<2x128xf32>
    %54 = arith.addf %44, %53 : vector<2x128xf32>
    %c2_i32 = arith.constant 2 : i32
    %55 = vector.broadcast %c2_i32 : i32 to vector<2x128xi32>
    %56 = arith.cmpi eq, %4, %55 : vector<2x128xi32>
    %cst_44 = arith.constant 0.000000e+00 : f32
    %57 = vector.broadcast %cst_44 : f32 to vector<2x128xf32>
    %58 = arith.select %56, %51, %57 : vector<2x128xi1>, vector<2x128xf32>
    %59 = arith.addf %49, %58 : vector<2x128xf32>
    %c0_45 = arith.constant 0 : index
    %c3_46 = arith.constant 3 : index
    %c0_47 = arith.constant 0 : index
    %c0_48 = arith.constant 0 : index
    %60 = vector.load %arg3[%c0_45, %c3_46, %c0_47, %c0_48] : memref<1x8x2x128xf32, #tpu.memory_space<vmem>>, vector<1x1x2x128xf32>
    %61 = vector.shape_cast %60 : vector<1x1x2x128xf32> to vector<2x128xf32>
    %62 = arith.subf %61, %27 : vector<2x128xf32>
    %63 = math.exp %62 : vector<2x128xf32>
    %64 = arith.addf %54, %63 : vector<2x128xf32>
    %c3_i32 = arith.constant 3 : i32
    %65 = vector.broadcast %c3_i32 : i32 to vector<2x128xi32>
    %66 = arith.cmpi eq, %4, %65 : vector<2x128xi32>
    %cst_49 = arith.constant 0.000000e+00 : f32
    %67 = vector.broadcast %cst_49 : f32 to vector<2x128xf32>
    %68 = arith.select %66, %61, %67 : vector<2x128xi1>, vector<2x128xf32>
    %69 = arith.addf %59, %68 : vector<2x128xf32>
    %c0_50 = arith.constant 0 : index
    %c4_51 = arith.constant 4 : index
    %c0_52 = arith.constant 0 : index
    %c0_53 = arith.constant 0 : index
    %70 = vector.load %arg3[%c0_50, %c4_51, %c0_52, %c0_53] : memref<1x8x2x128xf32, #tpu.memory_space<vmem>>, vector<1x1x2x128xf32>
    %71 = vector.shape_cast %70 : vector<1x1x2x128xf32> to vector<2x128xf32>
    %72 = arith.subf %71, %27 : vector<2x128xf32>
    %73 = math.exp %72 : vector<2x128xf32>
    %74 = arith.addf %64, %73 : vector<2x128xf32>
    %c4_i32 = arith.constant 4 : i32
    %75 = vector.broadcast %c4_i32 : i32 to vector<2x128xi32>
    %76 = arith.cmpi eq, %4, %75 : vector<2x128xi32>
    %cst_54 = arith.constant 0.000000e+00 : f32
    %77 = vector.broadcast %cst_54 : f32 to vector<2x128xf32>
    %78 = arith.select %76, %71, %77 : vector<2x128xi1>, vector<2x128xf32>
    %79 = arith.addf %69, %78 : vector<2x128xf32>
    %c0_55 = arith.constant 0 : index
    %c5_56 = arith.constant 5 : index
    %c0_57 = arith.constant 0 : index
    %c0_58 = arith.constant 0 : index
    %80 = vector.load %arg3[%c0_55, %c5_56, %c0_57, %c0_58] : memref<1x8x2x128xf32, #tpu.memory_space<vmem>>, vector<1x1x2x128xf32>
    %81 = vector.shape_cast %80 : vector<1x1x2x128xf32> to vector<2x128xf32>
    %82 = arith.subf %81, %27 : vector<2x128xf32>
    %83 = math.exp %82 : vector<2x128xf32>
    %84 = arith.addf %74, %83 : vector<2x128xf32>
    %c5_i32 = arith.constant 5 : i32
    %85 = vector.broadcast %c5_i32 : i32 to vector<2x128xi32>
    %86 = arith.cmpi eq, %4, %85 : vector<2x128xi32>
    %cst_59 = arith.constant 0.000000e+00 : f32
    %87 = vector.broadcast %cst_59 : f32 to vector<2x128xf32>
    %88 = arith.select %86, %81, %87 : vector<2x128xi1>, vector<2x128xf32>
    %89 = arith.addf %79, %88 : vector<2x128xf32>
    %c0_60 = arith.constant 0 : index
    %c6_61 = arith.constant 6 : index
    %c0_62 = arith.constant 0 : index
    %c0_63 = arith.constant 0 : index
    %90 = vector.load %arg3[%c0_60, %c6_61, %c0_62, %c0_63] : memref<1x8x2x128xf32, #tpu.memory_space<vmem>>, vector<1x1x2x128xf32>
    %91 = vector.shape_cast %90 : vector<1x1x2x128xf32> to vector<2x128xf32>
    %92 = arith.subf %91, %27 : vector<2x128xf32>
    %93 = math.exp %92 : vector<2x128xf32>
    %94 = arith.addf %84, %93 : vector<2x128xf32>
    %c6_i32 = arith.constant 6 : i32
    %95 = vector.broadcast %c6_i32 : i32 to vector<2x128xi32>
    %96 = arith.cmpi eq, %4, %95 : vector<2x128xi32>
    %cst_64 = arith.constant 0.000000e+00 : f32
    %97 = vector.broadcast %cst_64 : f32 to vector<2x128xf32>
    %98 = arith.select %96, %91, %97 : vector<2x128xi1>, vector<2x128xf32>
    %99 = arith.addf %89, %98 : vector<2x128xf32>
    %c0_65 = arith.constant 0 : index
    %c7_66 = arith.constant 7 : index
    %c0_67 = arith.constant 0 : index
    %c0_68 = arith.constant 0 : index
    %100 = vector.load %arg3[%c0_65, %c7_66, %c0_67, %c0_68] : memref<1x8x2x128xf32, #tpu.memory_space<vmem>>, vector<1x1x2x128xf32>
    %101 = vector.shape_cast %100 : vector<1x1x2x128xf32> to vector<2x128xf32>
    %102 = arith.subf %101, %27 : vector<2x128xf32>
    %103 = math.exp %102 : vector<2x128xf32>
    %104 = arith.addf %94, %103 : vector<2x128xf32>
    %c7_i32 = arith.constant 7 : i32
    %105 = vector.broadcast %c7_i32 : i32 to vector<2x128xi32>
    %106 = arith.cmpi eq, %4, %105 : vector<2x128xi32>
    %cst_69 = arith.constant 0.000000e+00 : f32
    %107 = vector.broadcast %cst_69 : f32 to vector<2x128xf32>
    %108 = arith.select %106, %101, %107 : vector<2x128xi1>, vector<2x128xf32>
    %109 = arith.addf %99, %108 : vector<2x128xf32>
    %110 = math.log %104 : vector<2x128xf32>
    %111 = arith.addf %27, %110 : vector<2x128xf32>
    %c-1_i32 = arith.constant -1 : i32
    %112 = vector.broadcast %c-1_i32 : i32 to vector<2x128xi32>
    %113 = arith.cmpi ne, %4, %112 : vector<2x128xi32>
    %114 = arith.subf %111, %109 : vector<2x128xf32>
    %cst_70 = arith.constant 0.000000e+00 : f32
    %115 = vector.broadcast %cst_70 : f32 to vector<2x128xf32>
    %116 = arith.select %113, %114, %115 : vector<2x128xi1>, vector<2x128xf32>
    %c0_71 = arith.constant 0 : index
    %c0_72 = arith.constant 0 : index
    %c0_73 = arith.constant 0 : index
    %c0_74 = arith.constant 0 : index
    %117 = vector.load %arg5[%c0_71, %c0_72, %c0_73, %c0_74] : memref<1x1x2x128xf32, #tpu.memory_space<vmem>>, vector<1x1x2x128xf32>
    %118 = vector.shape_cast %117 : vector<1x1x2x128xf32> to vector<2x128xf32>
    %119 = arith.addf %118, %116 : vector<2x128xf32>
    %c0_75 = arith.constant 0 : index
    %c0_76 = arith.constant 0 : index
    %c0_77 = arith.constant 0 : index
    %c0_78 = arith.constant 0 : index
    %120 = vector.load %arg5[%c0_75, %c0_76, %c0_77, %c0_78] : memref<1x1x2x128xf32, #tpu.memory_space<vmem>>, vector<1x1x2x128xf32>
    %121 = vector.shape_cast %120 : vector<1x1x2x128xf32> to vector<2x128xf32>
    %122 = vector.shape_cast %119 : vector<2x128xf32> to vector<1x1x2x128xf32>
    tpu.vector_store %arg5[%c0_75, %c0_76, %c0_77, %c0_78], %122 {strides = array<i32>} : memref<1x1x2x128xf32, #tpu.memory_space<vmem>>, vector<1x1x2x128xf32>,
    %c0_79 = arith.constant 0 : index
    %c0_80 = arith.constant 0 : index
    %c0_81 = arith.constant 0 : index
    %c0_82 = arith.constant 0 : index
    %123 = vector.load %arg6[%c0_79, %c0_80, %c0_81, %c0_82] : memref<1x1x2x128xf32, #tpu.memory_space<vmem>>, vector<1x1x2x128xf32>
    %124 = vector.shape_cast %123 : vector<1x1x2x128xf32> to vector<2x128xf32>
    %125 = arith.extui %113 : vector<2x128xi1> to vector<2x128xi32>
    %126 = arith.sitofp %125 : vector<2x128xi32> to vector<2x128xf32>
    %127 = arith.addf %124, %126 : vector<2x128xf32>
    %c0_83 = arith.constant 0 : index
    %c0_84 = arith.constant 0 : index
    %c0_85 = arith.constant 0 : index
    %c0_86 = arith.constant 0 : index
    %128 = vector.load %arg6[%c0_83, %c0_84, %c0_85, %c0_86] : memref<1x1x2x128xf32, #tpu.memory_space<vmem>>, vector<1x1x2x128xf32>
    %129 = vector.shape_cast %128 : vector<1x1x2x128xf32> to vector<2x128xf32>
    %130 = vector.shape_cast %127 : vector<2x128xf32> to vector<1x1x2x128xf32>
    tpu.vector_store %arg6[%c0_83, %c0_84, %c0_85, %c0_86], %130 {strides = array<i32>} : memref<1x1x2x128xf32, #tpu.memory_space<vmem>>, vector<1x1x2x128xf32>,
    return
  }
  func.func @transform_0(%arg0: i32, %arg1: i32, %arg2: i32) -> (i32, i32, i32, i32) {
    %c1_i32 = arith.constant 1 : i32
    %0 = arith.muli %arg1, %c1_i32 : i32
    %1 = arith.addi %0, %arg2 : i32
    %c0_i32 = arith.constant 0 : i32
    %2 = arith.minsi %1, %c0_i32 : i32
    %c0_i32_0 = arith.constant 0 : i32
    %c0_i32_1 = arith.constant 0 : i32
    %c0_i32_2 = arith.constant 0 : i32
    return %arg0, %c0_i32_0, %2, %c0_i32_1 : i32, i32, i32, i32
  }
  func.func @transform_1(%arg0: i32, %arg1: i32, %arg2: i32) -> (i32, i32, i32) {
    %c1_i32 = arith.constant 1 : i32
    %0 = arith.muli %arg1, %c1_i32 : i32
    %1 = arith.addi %0, %arg2 : i32
    %c0_i32 = arith.constant 0 : i32
    %2 = arith.minsi %1, %c0_i32 : i32
    %c0_i32_0 = arith.constant 0 : i32
    %c0_i32_1 = arith.constant 0 : i32
    return %arg0, %2, %c0_i32_0 : i32, i32, i32
  }
  func.func @transform_2(%arg0: i32, %arg1: i32, %arg2: i32) -> (i32, i32, i32, i32) {
    %c0_i32 = arith.constant 0 : i32
    %c0_i32_0 = arith.constant 0 : i32
    %c0_i32_1 = arith.constant 0 : i32
    return %arg0, %arg1, %c0_i32, %c0_i32_0 : i32, i32, i32, i32
  }
  func.func @transform_3(%arg0: i32, %arg1: i32, %arg2: i32) -> (i32, i32, i32, i32) {
    %c0_i32 = arith.constant 0 : i32
    %c0_i32_0 = arith.constant 0 : i32
    %c0_i32_1 = arith.constant 0 : i32
    return %arg0, %arg1, %c0_i32, %c0_i32_0 : i32, i32, i32, i32
  }
}

</mosaic_0001>

<llo_original>
// kernel: tpu_custom_call.1
$region0: #{tpu_custom_call.1}
  #allocation0 [shape = 'u32[]', space=smem, size = 0x4, offset = 0x4, fixed_abs, tag = 'smem constant byte address 0x4 - core index']
  #allocation1 [shape = 'u32[72,128]{1,0:T(1,128)}', space=vmem, size = 0x9000, scoped, tag = 'internal scratch']
  %s0 = inlined_call_operand.hbm [shape: f32[2,8,2,128], index: 0, kind: input, shape index: {}]
  %s1 = inlined_call_operand.hbm [shape: s32[2,2,128], index: 1, kind: input, shape index: {}]
  %s2 = inlined_call_operand.hbm [shape: f32[2,1,2,128], index: 2, kind: output, shape index: {0}]
  %s3 = inlined_call_operand.hbm [shape: f32[2,1,2,128], index: 3, kind: output, shape index: {1}]
  %4 = xla_tuple %s2, %s3
  %s5 = sld [smem:[#allocation0]]
  $region61: #{tpu_custom_call.1} parent=0
    _
  %s7 = ssub.s32 1, %s5
  %s8 = scalar_select 0, %s7, %s5
  $region1: #{tpu_custom_call.1} parent=0
    #allocation2 [shape = 'u8[16384]{0}', space=vmem, size = 0x4000, scoped, tag = 'input window, operand 0']
    #allocation3 [shape = 's32[2]{0}', space=sflag, size = 0x8, scoped, tag = 'scoped memory for tpu_custom_call.1']
    #allocation4 [shape = 's32[2]{0}', space=sflag, size = 0x8, scoped, tag = 'scoped memory for tpu_custom_call.1']
    #allocation5 [shape = 'u8[2048]{0}', space=vmem, size = 0x800, scoped, tag = 'input window, operand 1']
    #allocation6 [shape = 's32[2]{0}', space=sflag, size = 0x8, scoped, tag = 'scoped memory for tpu_custom_call.1']
    #allocation7 [shape = 'u8[2048]{0}', space=vmem, size = 0x800, scoped, tag = 'output window, operand 0']
    #allocation8 [shape = 'u8[2048]{0}', space=vmem, size = 0x800, scoped, tag = 'output window, operand 1']
    #allocation9 [shape = 's32[2]{0}', space=sflag, size = 0x8, scoped, tag = 'scoped memory for tpu_custom_call.1']
    %9 = vsyncpa [#allocation3], 0
    %s10 = scalar_lea.sflag [#allocation3], 1
    %11 = vsyncpa %s10, 0
    %12 = vsyncpa [#allocation6], 0
    %s13 = scalar_lea.sflag [#allocation6], 1
    %14 = vsyncpa %s13, 0
    %15 = vsyncpa [#allocation4], 0
    %s16 = scalar_lea.sflag [#allocation4], 1
    %17 = vsyncpa %s16, 0
    %18 = vsyncpa [#allocation9], 0
    %s19 = scalar_lea.sflag [#allocation9], 1
    %20 = vsyncpa %s19, 0
    loop: start=0, step=1, limit=4
    $region2: #{tpu_custom_call.1} parent=1 // loop_pre_header
      _
    $region3: #{tpu_custom_call.1} parent=1 // loop_header
      %s22 = sphi 0, %s26
      %p23 = scmp.ge.s32.totalorder %s22, 4
      %s29 = sphi 0, %s48
      %s30 = sphi 0, %s44
      %s31 = sphi 0, %s40
      %s32 = sphi 0, %s29
      %s33 = sphi 0, %s30
      %s34 = sphi 0, %s31
      %s35 = sphi 0, %s32
      %s36 = sphi 0, %s33
      %s37 = sphi 0, %s34
      %s59 = sphi 0, %s61
      %s62 = sphi 0, %s59
      %s63 = sphi 0, %s62
      %s79 = sphi 0, %s63
      %s93 = sphi 0, %s95
      %s96 = sphi 0, %s93
      %s97 = sphi 0, %s96
      %s113 = sphi 0, %s97
      %s121 = sphi 0, %s123
      %s124 = sphi 0, %s121
      %s125 = sphi 0, %s124
      %s141 = sphi 0, %s125
      %s149 = sphi 0, %s151
      %s152 = sphi 0, %s149
      %s153 = sphi 0, %s152
      %s169 = sphi 0, %s153
    $region4: #{tpu_custom_call.1} parent=1 // loop_header_branch
      %25 = sbr.rel (%p23) target = $region8
    $region5: #{tpu_custom_call.1} parent=1 // loop_body
      %s27 = ssub.s32 %s22, 1
      %s28 = ssub.s32 %s22, 2
      %s38 = sadd.s32 1, %s31
      %p39 = scmp.ge.s32.totalorder %s38, 1
      %s40 = scalar_select %p39, 0, %s38
      %s41 = sadd.s32 1, %s30
      %s42 = scalar_select %p39, %s41, %s30
      %p43 = scmp.ge.s32.totalorder %s42, 1
      %s44 = scalar_select %p43, 0, %s42
      %s45 = sadd.s32 1, %s29
      %s46 = scalar_select %p43, %s45, %s29
      %p47 = scmp.ge.s32.totalorder %s46, 2
      %s48 = scalar_select %p47, 0, %s46
      %s49 = sadd.s32 %s30, %s31
      %p50 = scmp.lt.s32.totalorder %s49, 0
      %s51 = scalar_select %p50, %s49, 0
      %s52 = sadd.s32 %s44, %s40
      %p53 = scmp.lt.s32.totalorder %s52, 0
      %s54 = scalar_select %p53, %s52, 0
      %s55 = ssub.s32 %s29, %s48
      %s56 = ssub.s32 %s51, %s54
      %s57 = sor.u32 %s55, %s56
      %p58 = scmp.eq.s32.totalorder %s57, 0
      %s60 = sadd.s32 %s59, 1
      %s61 = scalar_select %p58, %s59, %s60
      %p64 = pneg %p58
      %p65 = scmp.eq.s32.totalorder %s22, 1
      %p66 = por %p64, %p65
      %p67 = scmp.ne.s32.totalorder %s59, %s62
      %p68 = scmp.eq.s32.totalorder %s22, 0
      %p69 = por %p67, %p68
      %p70 = scmp.ne.s32.totalorder %s59, %s62
      %p71 = scmp.eq.s32.totalorder %s27, 1
      %p72 = por %p70, %p71
      %p73 = scmp.ne.s32.totalorder %s62, %s63
      %p74 = scmp.eq.s32.totalorder %s27, 0
      %p75 = por %p73, %p74
      %p76 = scmp.ne.s32.totalorder %s62, %s63
      %p77 = scmp.eq.s32.totalorder %s28, 1
      %p78 = por %p76, %p77
      %p80 = scmp.ne.s32.totalorder %s63, %s79
      %p81 = scmp.eq.s32.totalorder %s28, 0
      %p82 = por %p80, %p81
      %s83 = sadd.s32 %s30, %s31
      %p84 = scmp.lt.s32.totalorder %s83, 0
      %s85 = scalar_select %p84, %s83, 0
      %s86 = sadd.s32 %s44, %s40
      %p87 = scmp.lt.s32.totalorder %s86, 0
      %s88 = scalar_select %p87, %s86, 0
      %s89 = ssub.s32 %s29, %s48
      %s90 = ssub.s32 %s85, %s88
      %s91 = sor.u32 %s89, %s90
      %p92 = scmp.eq.s32.totalorder %s91, 0
      %s94 = sadd.s32 %s93, 1
      %s95 = scalar_select %p92, %s93, %s94
      %p98 = pneg %p92
      %p99 = scmp.eq.s32.totalorder %s22, 1
      %p100 = por %p98, %p99
      %p101 = scmp.ne.s32.totalorder %s93, %s96
      %p102 = scmp.eq.s32.totalorder %s22, 0
      %p103 = por %p101, %p102
      %p104 = scmp.ne.s32.totalorder %s93, %s96
      %p105 = scmp.eq.s32.totalorder %s27, 1
      %p106 = por %p104, %p105
      %p107 = scmp.ne.s32.totalorder %s96, %s97
      %p108 = scmp.eq.s32.totalorder %s27, 0
      %p109 = por %p107, %p108
      %p110 = scmp.ne.s32.totalorder %s96, %s97
      %p111 = scmp.eq.s32.totalorder %s28, 1
      %p112 = por %p110, %p111
      %p114 = scmp.ne.s32.totalorder %s97, %s113
      %p115 = scmp.eq.s32.totalorder %s28, 0
      %p116 = por %p114, %p115
      %s117 = ssub.s32 %s29, %s48
      %s118 = ssub.s32 %s30, %s44
      %s119 = sor.u32 %s117, %s118
      %p120 = scmp.eq.s32.totalorder %s119, 0
      %s122 = sadd.s32 %s121, 1
      %s123 = scalar_select %p120, %s121, %s122
      %p126 = pneg %p120
      %p127 = scmp.eq.s32.totalorder %s22, 1
      %p128 = por %p126, %p127
      %p129 = scmp.ne.s32.totalorder %s121, %s124
      %p130 = scmp.eq.s32.totalorder %s22, 0
      %p131 = por %p129, %p130
      %p132 = scmp.ne.s32.totalorder %s121, %s124
      %p133 = scmp.eq.s32.totalorder %s27, 1
      %p134 = por %p132, %p133
      %p135 = scmp.ne.s32.totalorder %s124, %s125
      %p136 = scmp.eq.s32.totalorder %s27, 0
      %p137 = por %p135, %p136
      %p138 = scmp.ne.s32.totalorder %s124, %s125
      %p139 = scmp.eq.s32.totalorder %s28, 1
      %p140 = por %p138, %p139
      %p142 = scmp.ne.s32.totalorder %s125, %s141
      %p143 = scmp.eq.s32.totalorder %s28, 0
      %p144 = por %p142, %p143
      %s145 = ssub.s32 %s29, %s48
      %s146 = ssub.s32 %s30, %s44
      %s147 = sor.u32 %s145, %s146
      %p148 = scmp.eq.s32.totalorder %s147, 0
      %s150 = sadd.s32 %s149, 1
      %s151 = scalar_select %p148, %s149, %s150
      %p154 = pneg %p148
      %p155 = scmp.eq.s32.totalorder %s22, 1
      %p156 = por %p154, %p155
      %p157 = scmp.ne.s32.totalorder %s149, %s152
      %p158 = scmp.eq.s32.totalorder %s22, 0
      %p159 = por %p157, %p158
      %p160 = scmp.ne.s32.totalorder %s149, %s152
      %p161 = scmp.eq.s32.totalorder %s27, 1
      %p162 = por %p160, %p161
      %p163 = scmp.ne.s32.totalorder %s152, %s153
      %p164 = scmp.eq.s32.totalorder %s27, 0
      %p165 = por %p163, %p164
      %p166 = scmp.ne.s32.totalorder %s152, %s153
      %p167 = scmp.eq.s32.totalorder %s28, 1
      %p168 = por %p166, %p167
      %p170 = scmp.ne.s32.totalorder %s153, %s169
      %p171 = scmp.eq.s32.totalorder %s28, 0
      %p172 = por %p170, %p171
      %p173 = scmp.le.s32.totalorder 1, %s22
      %p174 = scmp.lt.s32.totalorder %s22, 3
      %p175 = pnand %p173, %p174
      %p176 = pneg %p175
      // Predicated region
      $region9: #{tpu_custom_call.1} parent=5 // pred_check
        _
      $region10: #{tpu_custom_call.1} parent=5 // pred_check_branch
        %178 = sbr.rel (%p175) target = $region12
      $region11: #{tpu_custom_call.1} parent=5 // pred_region
        %s179 = ssub.s32 %s22, 1
      $region12: #{tpu_custom_call.1} parent=5 // pred_fallthru
        _
      %p180 = scmp.lt.s32.totalorder %s22, 2
      // Predicated region
      $region13: #{tpu_custom_call.1} parent=5 // pred_check
        %p181 = pneg %p180
      $region14: #{tpu_custom_call.1} parent=5 // pred_check_branch
        %183 = sbr.rel (%p181) target = $region16
      $region15: #{tpu_custom_call.1} parent=5 // pred_region
        // Predicated region
        $region17: #{tpu_custom_call.1} parent=15 // pred_check
          %p184 = pneg %p69
        $region18: #{tpu_custom_call.1} parent=15 // pred_check_branch
          %186 = sbr.rel (%p184) target = $region20
        $region19: #{tpu_custom_call.1} parent=15 // pred_region
          %s187 = sand.u32 %s59, 1
          %s188 = scalar_lea.sflag [#allocation3], %s187
          %s189 = sand.u32 %s59, 1
          %s190 = smul.addr %s189, 16
          %s191 = scalar_lea.vmem [#allocation2], %s190
          %s192 = sadd.s32 %s30, %s31
          %p193 = scmp.lt.s32.totalorder %s192, 0
          %s194 = scalar_select %p193, %s192, 0
          %196 = vsyncadd %s188, 0
          %s197 = smul.addr %s29, 8
          %s198 = sadd.s32 %s194, %s197
          %s199 = smul.addr %s198, 2
          %s200 = scalar_lea.hbm %s0, %s199
          %s201 = sshll.u32 %s200, 4
          %s202 = int_to_ptr.hbm [resolvable:$true] %s201
          %s203 = sshll.u32 %s191, 4
          %s204 = int_to_ptr.vmem [resolvable:$true] %s203
          %209 = dma.hbm_to_vmem [thread:$0]  %s202, 256, %s204, %s188, 32, 32, 2
        $region20: #{tpu_custom_call.1} parent=15 // pred_fallthru
          _
        // Predicated region
        $region21: #{tpu_custom_call.1} parent=15 // pred_check
          %p210 = pneg %p103
        $region22: #{tpu_custom_call.1} parent=15 // pred_check_branch
          %212 = sbr.rel (%p210) target = $region24
        $region23: #{tpu_custom_call.1} parent=15 // pred_region
          %s213 = sand.u32 %s93, 1
          %s214 = scalar_lea.sflag [#allocation6], %s213
          %s215 = sand.u32 %s93, 1
          %s216 = smul.addr %s215, 2
          %s217 = scalar_lea.vmem [#allocation5], %s216
          %s218 = sadd.s32 %s30, %s31
          %p219 = scmp.lt.s32.totalorder %s218, 0
          %s220 = scalar_select %p219, %s218, 0
          %222 = vsyncadd %s214, 0
          %s223 = sadd.s32 %s220, %s29
          %s224 = smul.addr %s223, 2
          %s225 = scalar_lea.hbm %s1, %s224
          %s227 = sshll.u32 %s225, 4
          %s228 = int_to_ptr.hbm [resolvable:$true] %s227
          %s229 = sshll.u32 %s217, 4
          %s230 = int_to_ptr.vmem [resolvable:$true] %s229
          %232 = dma.hbm_to_vmem [thread:$0]  %s228, 32, %s230, %s214
        $region24: #{tpu_custom_call.1} parent=15 // pred_fallthru
          _
      $region16: #{tpu_custom_call.1} parent=5 // pred_fallthru
        _
      %p233 = scmp.le.s32.totalorder 1, %s22
      %p234 = scmp.lt.s32.totalorder %s22, 3
      %p235 = pnand %p233, %p234
      %p236 = pneg %p235
      // Predicated region
      $region25: #{tpu_custom_call.1} parent=5 // pred_check
        _
      $region26: #{tpu_custom_call.1} parent=5 // pred_check_branch
        %238 = sbr.rel (%p235) target = $region28
      $region27: #{tpu_custom_call.1} parent=5 // pred_region
        %s239 = ssub.s32 %s22, 1
        %s240 = sand.u32 %s62, 1
        %s241 = scalar_lea.sflag [#allocation3], %s240
        %s242 = sand.u32 %s62, 1
        %s243 = smul.addr %s242, 16
        %s244 = scalar_lea.vmem [#allocation2], %s243
        // Predicated region
        $region29: #{tpu_custom_call.1} parent=27 // pred_check
          %p245 = pneg %p75
        $region30: #{tpu_custom_call.1} parent=27 // pred_check_branch
          %247 = sbr.rel (%p245) target = $region32
        $region31: #{tpu_custom_call.1} parent=27 // pred_region
          %249 = dma.done %s241, 256
        $region32: #{tpu_custom_call.1} parent=27 // pred_fallthru
          _
        %s250 = sand.u32 %s96, 1
        %s251 = scalar_lea.sflag [#allocation6], %s250
        %s252 = sand.u32 %s96, 1
        %s253 = smul.addr %s252, 2
        %s254 = scalar_lea.vmem [#allocation5], %s253
        // Predicated region
        $region33: #{tpu_custom_call.1} parent=27 // pred_check
          %p255 = pneg %p109
        $region34: #{tpu_custom_call.1} parent=27 // pred_check_branch
          %257 = sbr.rel (%p255) target = $region36
        $region35: #{tpu_custom_call.1} parent=27 // pred_region
          %259 = dma.done %s251, 32
        $region36: #{tpu_custom_call.1} parent=27 // pred_fallthru
          _
        %s260 = sand.u32 %s62, 1
        %s261 = scalar_lea.sflag [#allocation3], %s260
        %s262 = sand.u32 %s62, 1
        %s263 = smul.addr %s262, 16
        %s264 = scalar_lea.vmem [#allocation2], %s263
        %p265 = pneg %p75
        %p266 = pneg %p72
        %s267 = sand.u32 %s96, 1
        %s268 = scalar_lea.sflag [#allocation6], %s267
        %s269 = sand.u32 %s96, 1
        %s270 = smul.addr %s269, 2
        %s271 = scalar_lea.vmem [#allocation5], %s270
        %p272 = pneg %p109
        %p273 = pneg %p106
        %p274 = pneg %p137
        %p275 = pneg %p134
        %s276 = sand.u32 %s124, 1
        %s277 = scalar_lea.sflag [#allocation4], %s276
        %s278 = sand.u32 %s124, 1
        %s279 = smul.addr %s278, 2
        %s280 = scalar_lea.vmem [#allocation7], %s279
        %p281 = pneg %p165
        %p282 = pneg %p162
        %s283 = sand.u32 %s152, 1
        %s284 = scalar_lea.sflag [#allocation9], %s283
        %s285 = sand.u32 %s152, 1
        %s286 = smul.addr %s285, 2
        %s287 = scalar_lea.vmem [#allocation8], %s286
        %s288 = sadd.s32 %s33, %s34
        %p289 = scmp.lt.s32.totalorder %s288, 0
        %s290 = scalar_select %p289, %s288, 0
        %s291 = sadd.s32 %s33, %s34
        %p292 = scmp.lt.s32.totalorder %s291, 0
        %s293 = scalar_select %p292, %s291, 0
        %p294 = scmp.eq.s32.totalorder %s34, 0
        // Predicated region
        $region37: #{tpu_custom_call.1} parent=27 // pred_check
          %p295 = pneg %p294
        $region38: #{tpu_custom_call.1} parent=27 // pred_check_branch
          %297 = sbr.rel (%p295) target = $region40
        $region39: #{tpu_custom_call.1} parent=27 // pred_region
          %298 = vst [vmem:[%s280] sm:$0x3] 0.0
          %299 = vst [vmem:[%s287] sm:$0x3] 0.0
        $region40: #{tpu_custom_call.1} parent=27 // pred_fallthru
          _
        %v300 = vld [vmem:[%s254] sm:$0x3]
        %v301 = vld [vmem:[%s244] sm:$0x3]
        %s302 = scalar_lea.vmem %s244, 2 [#allocation2]
        %v303 = vld [vmem:[%s302] sm:$0x3]
        %v304 = vmax.f32 %v301, %v303
        %s305 = scalar_lea.vmem %s244, 4 [#allocation2]
        %v306 = vld [vmem:[%s305] sm:$0x3]
        %v307 = vmax.f32 %v304, %v306
        %s308 = scalar_lea.vmem %s244, 6 [#allocation2]
        %v309 = vld [vmem:[%s308] sm:$0x3]
        %v310 = vmax.f32 %v307, %v309
        %s311 = scalar_lea.vmem %s244, 8 [#allocation2]
        %v312 = vld [vmem:[%s311] sm:$0x3]
        %v313 = vmax.f32 %v310, %v312
        %s314 = scalar_lea.vmem %s244, 10 [#allocation2]
        %v315 = vld [vmem:[%s314] sm:$0x3]
        %v316 = vmax.f32 %v313, %v315
        %s317 = scalar_lea.vmem %s244, 12 [#allocation2]
        %v318 = vld [vmem:[%s317] sm:$0x3]
        %v319 = vmax.f32 %v316, %v318
        %s320 = scalar_lea.vmem %s244, 14 [#allocation2]
        %v321 = vld [vmem:[%s320] sm:$0x3]
        %v322 = vmax.f32 %v319, %v321
        %v323 = vsub.f32 %v301, %v322
        %v324 = vmul.f32 %v323, 1.442695
        %v325 = vpow.pop %v324
        %v326 = vadd.f32 %v325, 0.0
        %vm327 = vcmp.eq.s32.totalorder %v300, 0
        %v328 = vsel %vm327, %v301, 0.0
        %v329 = vadd.f32 %v328, 0.0
        %v330 = vsub.f32 %v303, %v322
        %v331 = vmul.f32 %v330, 1.442695
        %v332 = vpow.pop %v331
        %v333 = vadd.f32 %v326, %v332
        %vm334 = vcmp.eq.s32.totalorder %v300, 1
        %v335 = vsel %vm334, %v303, 0.0
        %v336 = vadd.f32 %v329, %v335
        %v337 = vsub.f32 %v306, %v322
        %v338 = vmul.f32 %v337, 1.442695
        %v339 = vpow.pop %v338
        %v340 = vadd.f32 %v333, %v339
        %vm341 = vcmp.eq.s32.totalorder %v300, 2
        %v342 = vsel %vm341, %v306, 0.0
        %v343 = vadd.f32 %v336, %v342
        %v344 = vsub.f32 %v309, %v322
        %v345 = vmul.f32 %v344, 1.442695
        %v346 = vpow.pop %v345
        %v347 = vadd.f32 %v340, %v346
        %vm348 = vcmp.eq.s32.totalorder %v300, 3
        %v349 = vsel %vm348, %v309, 0.0
        %v350 = vadd.f32 %v343, %v349
        %v351 = vsub.f32 %v312, %v322
        %v352 = vmul.f32 %v351, 1.442695
        %v353 = vpow.pop %v352
        %v354 = vadd.f32 %v347, %v353
        %vm355 = vcmp.eq.s32.totalorder %v300, 4
        %v356 = vsel %vm355, %v312, 0.0
        %v357 = vadd.f32 %v350, %v356
        %v358 = vsub.f32 %v315, %v322
        %v359 = vmul.f32 %v358, 1.442695
        %v360 = vpow.pop %v359
        %v361 = vadd.f32 %v354, %v360
        %vm362 = vcmp.eq.s32.totalorder %v300, 5
        %v363 = vsel %vm362, %v315, 0.0
        %v364 = vadd.f32 %v357, %v363
        %v365 = vsub.f32 %v318, %v322
        %v366 = vmul.f32 %v365, 1.442695
        %v367 = vpow.pop %v366
        %v368 = vadd.f32 %v361, %v367
        %vm369 = vcmp.eq.s32.totalorder %v300, 6
        %v370 = vsel %vm369, %v318, 0.0
        %v371 = vadd.f32 %v364, %v370
        %v372 = vsub.f32 %v321, %v322
        %v373 = vmul.f32 %v372, 1.442695
        %v374 = vpow.pop %v373
        %v375 = vadd.f32 %v368, %v374
        %vm376 = vcmp.eq.s32.totalorder %v300, 7
        %v377 = vsel %vm376, %v321, 0.0
        %v378 = vadd.f32 %v371, %v377
        %v379 = vlog2.pop %v375
        %v380 = vmul.f32 %v379, 0.6931472
        %v381 = vadd.f32 %v322, %v380
        %vm382 = vcmp.ne.s32.totalorder %v300, 4294967295
        %v383 = vsub.f32 %v381, %v378
        %v384 = vsel %vm382, %v383, 0.0
        %v385 = vld [vmem:[%s280] sm:$0x3]
        %v386 = vadd.f32 %v385, %v384
        %387 = vst [vmem:[%s280] sm:$0x3] %v386
        %v388 = vld [vmem:[%s287] sm:$0x3]
        %v389 = vsel %vm382, 1, 0
        %v390 = vcvt.s32.f32 %v389
        %v391 = vadd.f32 %v388, %v390
        %392 = vst [vmem:[%s287] sm:$0x3] %v391
        %s393 = sand.u32 %s124, 1
        %s394 = scalar_lea.sflag [#allocation4], %s393
        %s395 = sand.u32 %s124, 1
        %s396 = smul.addr %s395, 2
        %s397 = scalar_lea.vmem [#allocation7], %s396
        %s398 = sand.u32 %s152, 1
        %s399 = scalar_lea.sflag [#allocation9], %s398
        %s400 = sand.u32 %s152, 1
        %s401 = smul.addr %s400, 2
        %s402 = scalar_lea.vmem [#allocation8], %s401
        // Predicated region
        $region41: #{tpu_custom_call.1} parent=27 // pred_check
          %p403 = pneg %p134
        $region42: #{tpu_custom_call.1} parent=27 // pred_check_branch
          %405 = sbr.rel (%p403) target = $region44
        $region43: #{tpu_custom_call.1} parent=27 // pred_region
          %407 = vsyncadd %s394, 0
          %s408 = sadd.s32 %s33, %s32
          %s409 = smul.addr %s408, 2
          %s410 = scalar_lea.hbm %s2, %s409
          %s412 = sshll.u32 %s397, 4
          %s413 = int_to_ptr.vmem [resolvable:$true] %s412
          %s414 = sshll.u32 %s410, 4
          %s415 = int_to_ptr.hbm [resolvable:$true] %s414
          %417 = dma.vmem_to_hbm [thread:$0]  %s413, 32, %s415, %s394
        $region44: #{tpu_custom_call.1} parent=27 // pred_fallthru
          _
        // Predicated region
        $region45: #{tpu_custom_call.1} parent=27 // pred_check
          %p418 = pneg %p162
        $region46: #{tpu_custom_call.1} parent=27 // pred_check_branch
          %420 = sbr.rel (%p418) target = $region48
        $region47: #{tpu_custom_call.1} parent=27 // pred_region
          %422 = vsyncadd %s399, 0
          %s423 = sadd.s32 %s33, %s32
          %s424 = smul.addr %s423, 2
          %s425 = scalar_lea.hbm %s3, %s424
          %s427 = sshll.u32 %s402, 4
          %s428 = int_to_ptr.vmem [resolvable:$true] %s427
          %s429 = sshll.u32 %s425, 4
          %s430 = int_to_ptr.hbm [resolvable:$true] %s429
          %432 = dma.vmem_to_hbm [thread:$0]  %s428, 32, %s430, %s399
        $region48: #{tpu_custom_call.1} parent=27 // pred_fallthru
          _
      $region28: #{tpu_custom_call.1} parent=5 // pred_fallthru
        _
      %p433 = scmp.le.s32.totalorder 2, %s22
      // Predicated region
      $region49: #{tpu_custom_call.1} parent=5 // pred_check
        %p434 = pneg %p433
      $region50: #{tpu_custom_call.1} parent=5 // pred_check_branch
        %436 = sbr.rel (%p434) target = $region52
      $region51: #{tpu_custom_call.1} parent=5 // pred_region
        %s437 = ssub.s32 %s22, 2
        // Predicated region
        $region53: #{tpu_custom_call.1} parent=51 // pred_check
          %p438 = pneg %p140
        $region54: #{tpu_custom_call.1} parent=51 // pred_check_branch
          %440 = sbr.rel (%p438) target = $region56
        $region55: #{tpu_custom_call.1} parent=51 // pred_region
          %s441 = sand.u32 %s125, 1
          %s442 = scalar_lea.sflag [#allocation4], %s441
          %s443 = sand.u32 %s125, 1
          %s444 = smul.addr %s443, 2
          %s445 = scalar_lea.vmem [#allocation7], %s444
          %447 = dma.done %s442, 32
        $region56: #{tpu_custom_call.1} parent=51 // pred_fallthru
          _
        // Predicated region
        $region57: #{tpu_custom_call.1} parent=51 // pred_check
          %p448 = pneg %p168
        $region58: #{tpu_custom_call.1} parent=51 // pred_check_branch
          %450 = sbr.rel (%p448) target = $region60
        $region59: #{tpu_custom_call.1} parent=51 // pred_region
          %s451 = sand.u32 %s153, 1
          %s452 = scalar_lea.sflag [#allocation9], %s451
          %s453 = sand.u32 %s153, 1
          %s454 = smul.addr %s453, 2
          %s455 = scalar_lea.vmem [#allocation8], %s454
          %457 = dma.done %s452, 32
        $region60: #{tpu_custom_call.1} parent=51 // pred_fallthru
          _
      $region52: #{tpu_custom_call.1} parent=5 // pred_fallthru
        _
    $region6: #{tpu_custom_call.1} parent=1 // loop_footer
      %s26 = sadd.s32 1, %s22
    $region7: #{tpu_custom_call.1} parent=1 // loop_footer_branch
      %21 = sbr.rel target = $region3
    $region8: #{tpu_custom_call.1} parent=1 // loop_exit
      _
    %458 = vsyncpa [#allocation3], 1
    %s459 = scalar_lea.sflag [#allocation3], 1
    %460 = vsyncpa %s459, 1
    %461 = vsyncpa [#allocation6], 1
    %s462 = scalar_lea.sflag [#allocation6], 1
    %463 = vsyncpa %s462, 1
    %464 = vsyncpa [#allocation4], 1
    %s465 = scalar_lea.sflag [#allocation4], 1
    %466 = vsyncpa %s465, 1
    %467 = vsyncpa [#allocation9], 1
    %s468 = scalar_lea.sflag [#allocation9], 1
    %469 = vsyncpa %s468, 1

</llo_original>
